<compile_context>
chip_gen: v6e
topology: v6e:2x2x1
jax: 0.10.0
libtpu: 0.0.40
codegen_flags: <defaults>
</compile_context>

<pallas_src>
import math
import functools

import jax
import jax.numpy as jnp
from jax import lax
from jax.experimental import pallas as pl
from jax.experimental.pallas import tpu as pltpu


def make_pe_table(max_len: int, d_model: int, dtype=jnp.float32):
    """(max_len, d_model) sinusoidal table, exactly like the torch __init__."""
    position = jnp.arange(max_len, dtype=jnp.float32)[:, None]                # (L, 1)
    div_term = jnp.exp(
        jnp.arange(0, d_model, 2, dtype=jnp.float32) * (-math.log(10000.0) / d_model)
    )                                                                          # (D/2,)
    pe = jnp.zeros((max_len, d_model), jnp.float32)
    pe = pe.at[:, 0::2].set(jnp.sin(position * div_term))
    pe = pe.at[:, 1::2].set(jnp.cos(position * div_term))
    return pe.astype(dtype)


def _mix32(x):
    """lowbias32-style int32 hash: wrapping multiplies + logical shifts.

    Uses only standard lax/jnp integer ops so it lowers on TPU (Mosaic) and
    also runs under interpret mode, unlike pltpu.prng_seed/prng_random_bits.
    """
    x = x ^ lax.shift_right_logical(x, 16)
    x = x * jnp.int32(2146383149)        # 0x7feb352d
    x = x ^ lax.shift_right_logical(x, 15)
    x = x * jnp.int32(-2073254261)       # 0x846ca68b (as int32)
    x = x ^ lax.shift_right_logical(x, 16)
    return x


def _pos_enc_kernel(seed_ref, x_ref, pe_ref, o_ref, *, p: float, train: bool,
                    batch: int, ts: int):
    # x_ref: (TS, B*D)   pe_ref: (TS, D)   o_ref: (TS, B*D)
    x = x_ref[...].astype(jnp.float32)
    pe = pe_ref[...].astype(jnp.float32)
    # Lane-repeat pe across the batch: column j of the (S, B*D) slab holds
    # feature d = j % D, which is exactly what jnp.tile along lanes produces.
    y = x + jnp.tile(pe, (1, batch))

    if train and p > 0.0:
        rows, cols = y.shape
        # Counter-based PRNG: hash the global element index mixed with the seed.
        r = lax.broadcasted_iota(jnp.int32, (rows, cols), 0)
        c = lax.broadcasted_iota(jnp.int32, (rows, cols), 1)
        gidx = (r + pl.program_id(0) * jnp.int32(ts)) * jnp.int32(cols) + c
        h = _mix32(gidx + seed_ref[0] * jnp.int32(-1640531527))   # 0x9E3779B9
        u24 = lax.shift_right_logical(h, 8)                       # uniform in [0, 2^24)
        keep = u24 >= jnp.int32(int(p * (1 << 24)))               # keep prob = 1 - p
        scale = jnp.float32(1.0 / (1.0 - p))
        y = y * jnp.where(keep, scale, jnp.float32(0.0))          # inverted dropout

    o_ref[...] = y.astype(o_ref.dtype)


def positional_encoding(x, pe_table, *, p: float = 0.1, train: bool = False,
                        seed: int = 0, donate_x: bool = False):
    """x: (S, B, D). Returns x + pe[:S] with optional inverted dropout."""
    S, B, D = x.shape
    max_len, Dp = pe_table.shape
    assert Dp == D and S <= max_len

    # Tiny-problem fallback: kernel launch + per-grid-step overhead dominates.
    if S < 8 or (S * B * D) < 16384:
        y = x.astype(jnp.float32) + pe_table[:S].astype(jnp.float32)[:, None, :]
        if train and p > 0.0:
            keep = jax.random.bernoulli(jax.random.PRNGKey(seed), 1.0 - p, y.shape)
            y = jnp.where(keep, y / (1.0 - p), 0.0)
        return y.astype(x.dtype)

    # Lane-dense 2-D view (free row-major collapse of the trailing dims).
    x2 = x.reshape(S, B * D)

    # Tile along S: ~4 MiB per x tile, multiple of 8 rows, <= S.
    itemsize = jnp.dtype(x.dtype).itemsize
    target_bytes = 4 * 1024 * 1024
    rows = max(8, (target_bytes // (B * D * itemsize)) // 8 * 8)
    ts = max(8, min(rows, (S // 8) * 8))
    grid = (pl.cdiv(S, ts),)

    kernel = functools.partial(_pos_enc_kernel, p=float(p), train=bool(train),
                               batch=B, ts=ts)
    seed_arr = jnp.asarray([seed], dtype=jnp.int32)

    out2 = pl.pallas_call(
        kernel,
        out_shape=jax.ShapeDtypeStruct((S, B * D), x.dtype),
        grid_spec=pltpu.PrefetchScalarGridSpec(
            num_scalar_prefetch=1,
            grid=grid,
            in_specs=[
                pl.BlockSpec((ts, B * D), lambda i, seed: (i, 0)),   # x slab
                pl.BlockSpec((ts, D), lambda i, seed: (i, 0)),       # rows of pe_table
            ],
            out_specs=pl.BlockSpec((ts, B * D), lambda i, seed: (i, 0)),
        ),
        compiler_params=pltpu.CompilerParams(
            dimension_semantics=("parallel",),        # shard S across TCs on v7x
            vmem_limit_bytes=32 * 1024 * 1024,
        ),
        # Optional in-place update when the caller no longer needs x.
        input_output_aliases=({1: 0} if donate_x else {}),
    )(seed_arr, x2, pe_table)

    return out2.reshape(S, B, D)


if __name__ == "__main__":
    # Small shapes consistent with the module's forward: (seq, batch, d_model).
    S, B, D = 64, 4, 128
    MAX_LEN = 2000
    P = 0.1

    key = jax.random.PRNGKey(0)
    x = jax.random.normal(key, (S, B, D), dtype=jnp.float32)
    pe_table = make_pe_table(MAX_LEN, D)
    ref = x + pe_table[:S][:, None, :]

    # Eval-mode forward (dropout is identity) — must match the reference.
    out_eval = jax.block_until_ready(positional_encoding(x, pe_table, p=P, train=False))
    assert out_eval.shape == (S, B, D)
    assert jnp.allclose(out_eval, ref, atol=1e-5, rtol=1e-5), "eval-mode mismatch"

    # Train-mode forward: deterministic inverted dropout given the seed.
    out_train = jax.block_until_ready(
        positional_encoding(x, pe_table, p=P, train=True, seed=1234))
    assert out_train.shape == (S, B, D)
    dropped = out_train == 0.0
    kept_ok = jnp.where(dropped, True,
                        jnp.isclose(out_train, ref / (1.0 - P), atol=1e-5, rtol=1e-5))
    assert bool(jnp.all(kept_ok)), "kept values must equal ref / (1 - p)"
    drop_rate = float(jnp.mean(dropped.astype(jnp.float32)))
    assert 0.02 <= drop_rate <= 0.30, f"drop rate {drop_rate} far from p={P}"

    print("KERNEL_OK")
</pallas_src>

<mosaic_0001>
module attributes {stable_mosaic.version = 11 : i64} {
  func.func @_pos_enc_kernel(%arg0: i32, %arg1: memref<1xi32, #tpu.memory_space<smem>>, %arg2: memref<64x512xf32, #tpu.memory_space<vmem>>, %arg3: memref<64x128xf32, #tpu.memory_space<vmem>>, %arg4: memref<64x512xf32, #tpu.memory_space<vmem>>) attributes {dimension_semantics = [#tpu.dimension_semantics<parallel>], iteration_bounds = array<i64: 1>, scalar_prefetch = 1 : i64, scratch_operands = 0 : i64, tpu.core_type = #tpu.core_type<tc>, window_params = [{transform_indices = @transform_0, window_bounds = array<i64: 64, 512>}, {transform_indices = @transform_1, window_bounds = array<i64: 64, 128>}, {transform_indices = @transform_2, window_bounds = array<i64: 64, 512>}]} {
    %c0 = arith.constant 0 : index
    %c0_0 = arith.constant 0 : index
    %0 = vector.load %arg2[%c0, %c0_0] : memref<64x512xf32, #tpu.memory_space<vmem>>, vector<64x512xf32>
    %c0_1 = arith.constant 0 : index
    %c0_2 = arith.constant 0 : index
    %1 = vector.load %arg3[%c0_1, %c0_2] : memref<64x128xf32, #tpu.memory_space<vmem>>, vector<64x128xf32>
    %2 = tpu.concatenate %1, %1, %1, %1 in 1 : vector<64x128xf32>, vector<64x128xf32>, vector<64x128xf32>, vector<64x128xf32> -> vector<64x512xf32>
    %3 = arith.addf %0, %2 : vector<64x512xf32>
    %c0_3 = arith.constant 0 : index
    %c0_4 = arith.constant 0 : index
    %4 = vector.load %arg4[%c0_3, %c0_4] : memref<64x512xf32, #tpu.memory_space<vmem>>, vector<64x512xf32>
    tpu.vector_store %arg4[%c0_3, %c0_4], %3 {strides = array<i32>} : memref<64x512xf32, #tpu.memory_space<vmem>>, vector<64x512xf32>,
    return
  }
  func.func @transform_0(%arg0: i32, %arg1: memref<1xi32, #tpu.memory_space<smem>>) -> (i32, i32) {
    %c0_i32 = arith.constant 0 : i32
    %c0_i32_0 = arith.constant 0 : i32
    return %arg0, %c0_i32 : i32, i32
  }
  func.func @transform_1(%arg0: i32, %arg1: memref<1xi32, #tpu.memory_space<smem>>) -> (i32, i32) {
    %c0_i32 = arith.constant 0 : i32
    %c0_i32_0 = arith.constant 0 : i32
    return %arg0, %c0_i32 : i32, i32
  }
  func.func @transform_2(%arg0: i32, %arg1: memref<1xi32, #tpu.memory_space<smem>>) -> (i32, i32) {
    %c0_i32 = arith.constant 0 : i32
    %c0_i32_0 = arith.constant 0 : i32
    return %arg0, %c0_i32 : i32, i32
  }
}

</mosaic_0001>

<llo_original>
// kernel: tpu_custom_call.1
$region0: #{tpu_custom_call.1}
  #allocation0 [shape = 'u32[]', space=smem, size = 0x4, offset = 0x4, fixed_abs, tag = 'smem constant byte address 0x4 - core index']
  #allocation1 [shape = 'u32[144,128]{1,0:T(1,128)}', space=vmem, size = 0x12000, scoped, tag = 'internal scratch']
  #allocation2 [shape = 's32[1]{0}', space=sflag, size = 0x4, scoped, tag = 'scoped memory for tpu_custom_call.1']
  #allocation3 [shape = 's32[1]{0:T(128)S(6)}', space=smem, size = 0x200, scoped, tag = 'prefetched SMEM operand 0']
  %s0 = inlined_call_operand.<no memory space> [shape: s32[1], index: 0, kind: input, shape index: {}]
  %s1 = inlined_call_operand.hbm [shape: f32[64,512], index: 1, kind: input, shape index: {}]
  %s2 = inlined_call_operand.hbm [shape: f32[2000,128], index: 2, kind: input, shape index: {}]
  %s3 = inlined_call_operand.hbm [shape: f32[64,512], index: 3, kind: output, shape index: {}]
  %s4 = sld [smem:[#allocation0]]
  $region26: #{tpu_custom_call.1} parent=0
    _
  %s6 = ssub.s32 1, %s4
  %s7 = scalar_select 0, %s6, %s4
  %8 = sst [smem:[#allocation3]] %s0
  $region1: #{tpu_custom_call.1} parent=0
    #allocation4 [shape = 'u8[131072]{0}', space=vmem, size = 0x20000, scoped, tag = 'input window, operand 1, single buffered']
    #allocation5 [shape = 's32[1]{0}', space=sflag, size = 0x4, scoped, tag = 'scoped memory for tpu_custom_call.1']
    #allocation6 [shape = 's32[1]{0}', space=sflag, size = 0x4, scoped, tag = 'scoped memory for tpu_custom_call.1']
    #allocation7 [shape = 'u8[32768]{0}', space=vmem, size = 0x8000, scoped, tag = 'input window, operand 2, single buffered']
    #allocation8 [shape = 's32[1]{0}', space=sflag, size = 0x4, scoped, tag = 'scoped memory for tpu_custom_call.1']
    #allocation9 [shape = 'u8[131072]{0}', space=vmem, size = 0x20000, scoped, tag = 'output window, operand 0, single buffered']
    %9 = vsyncpa [#allocation5], 0
    %10 = vsyncpa [#allocation8], 0
    %11 = vsyncpa [#allocation6], 0
    // Predicated region
    $region2: #{tpu_custom_call.1} parent=1 // pred_check
      _
    $region3: #{tpu_custom_call.1} parent=1 // pred_check_branch
      %13 = sbr.rel (0) target = $region5
    $region4: #{tpu_custom_call.1} parent=1 // pred_region
      %s15 = ssub.s32 4096, 4096
      %16 = vsyncadd [#allocation5], %s15
      %s17 = sshll.u32 [#allocation4], 4
      %s18 = int_to_ptr.vmem [resolvable:$true] %s17
      %23 = dma.hbm_to_vmem [thread:$0]  %s1, 4096, %s18, [#allocation5], 512, 512, 32
    $region5: #{tpu_custom_call.1} parent=1 // pred_fallthru
      _
    // Predicated region
    $region6: #{tpu_custom_call.1} parent=1 // pred_check
      _
    $region7: #{tpu_custom_call.1} parent=1 // pred_check_branch
      %25 = sbr.rel (0) target = $region9
    $region8: #{tpu_custom_call.1} parent=1 // pred_region
      %s27 = ssub.s32 1024, 1024
      %28 = vsyncadd [#allocation8], %s27
      %s29 = sshll.u32 [#allocation7], 4
      %s30 = int_to_ptr.vmem [resolvable:$true] %s29
      %35 = dma.hbm_to_vmem [thread:$0]  %s2, 1024, %s30, [#allocation8], 128, 128, 8
    $region9: #{tpu_custom_call.1} parent=1 // pred_fallthru
      _
    // Predicated region
    $region10: #{tpu_custom_call.1} parent=1 // pred_check
      _
    $region11: #{tpu_custom_call.1} parent=1 // pred_check_branch
      %37 = sbr.rel (0) target = $region13
    $region12: #{tpu_custom_call.1} parent=1 // pred_region
      %38 = dma.done [#allocation5], 4096
    $region13: #{tpu_custom_call.1} parent=1 // pred_fallthru
      _
    // Predicated region
    $region14: #{tpu_custom_call.1} parent=1 // pred_check
      _
    $region15: #{tpu_custom_call.1} parent=1 // pred_check_branch
      %40 = sbr.rel (0) target = $region17
    $region16: #{tpu_custom_call.1} parent=1 // pred_region
      %41 = dma.done [#allocation8], 1024
    $region17: #{tpu_custom_call.1} parent=1 // pred_fallthru
      _
    %v42 = vld [vmem:[#allocation4] sm:$0xff]
    %v43 = vld [vmem:[#allocation4 + $0x8] sm:$0xff]
    %v44 = vld [vmem:[#allocation4 + $0x10] sm:$0xff]
    %v45 = vld [vmem:[#allocation4 + $0x18] sm:$0xff]
    %v46 = vld [vmem:[#allocation4 + $0x20] sm:$0xff]
    %v47 = vld [vmem:[#allocation4 + $0x28] sm:$0xff]
    %v48 = vld [vmem:[#allocation4 + $0x30] sm:$0xff]
    %v49 = vld [vmem:[#allocation4 + $0x38] sm:$0xff]
    %v50 = vld [vmem:[#allocation4 + $0x40] sm:$0xff]
    %v51 = vld [vmem:[#allocation4 + $0x48] sm:$0xff]
    %v52 = vld [vmem:[#allocation4 + $0x50] sm:$0xff]
    %v53 = vld [vmem:[#allocation4 + $0x58] sm:$0xff]
    %v54 = vld [vmem:[#allocation4 + $0x60] sm:$0xff]
    %v55 = vld [vmem:[#allocation4 + $0x68] sm:$0xff]
    %v56 = vld [vmem:[#allocation4 + $0x70] sm:$0xff]
    %v57 = vld [vmem:[#allocation4 + $0x78] sm:$0xff]
    %v58 = vld [vmem:[#allocation4 + $0x80] sm:$0xff]
    %v59 = vld [vmem:[#allocation4 + $0x88] sm:$0xff]
    %v60 = vld [vmem:[#allocation4 + $0x90] sm:$0xff]
    %v61 = vld [vmem:[#allocation4 + $0x98] sm:$0xff]
    %v62 = vld [vmem:[#allocation4 + $0xa0] sm:$0xff]
    %v63 = vld [vmem:[#allocation4 + $0xa8] sm:$0xff]
    %v64 = vld [vmem:[#allocation4 + $0xb0] sm:$0xff]
    %v65 = vld [vmem:[#allocation4 + $0xb8] sm:$0xff]
    %v66 = vld [vmem:[#allocation4 + $0xc0] sm:$0xff]
    %v67 = vld [vmem:[#allocation4 + $0xc8] sm:$0xff]
    %v68 = vld [vmem:[#allocation4 + $0xd0] sm:$0xff]
    %v69 = vld [vmem:[#allocation4 + $0xd8] sm:$0xff]
    %v70 = vld [vmem:[#allocation4 + $0xe0] sm:$0xff]
    %v71 = vld [vmem:[#allocation4 + $0xe8] sm:$0xff]
    %v72 = vld [vmem:[#allocation4 + $0xf0] sm:$0xff]
    %v73 = vld [vmem:[#allocation4 + $0xf8] sm:$0xff]
    %v74 = vld [vmem:[#allocation7] sm:$0xff]
    %v75 = vld [vmem:[#allocation7 + $0x8] sm:$0xff]
    %v76 = vld [vmem:[#allocation7 + $0x10] sm:$0xff]
    %v77 = vld [vmem:[#allocation7 + $0x18] sm:$0xff]
    %v78 = vld [vmem:[#allocation7 + $0x20] sm:$0xff]
    %v79 = vld [vmem:[#allocation7 + $0x28] sm:$0xff]
    %v80 = vld [vmem:[#allocation7 + $0x30] sm:$0xff]
    %v81 = vld [vmem:[#allocation7 + $0x38] sm:$0xff]
    %v82 = vadd.f32 %v42, %v74
    %v83 = vadd.f32 %v43, %v74
    %v84 = vadd.f32 %v44, %v74
    %v85 = vadd.f32 %v45, %v74
    %v86 = vadd.f32 %v46, %v75
    %v87 = vadd.f32 %v47, %v75
    %v88 = vadd.f32 %v48, %v75
    %v89 = vadd.f32 %v49, %v75
    %v90 = vadd.f32 %v50, %v76
    %v91 = vadd.f32 %v51, %v76
    %v92 = vadd.f32 %v52, %v76
    %v93 = vadd.f32 %v53, %v76
    %v94 = vadd.f32 %v54, %v77
    %v95 = vadd.f32 %v55, %v77
    %v96 = vadd.f32 %v56, %v77
    %v97 = vadd.f32 %v57, %v77
    %v98 = vadd.f32 %v58, %v78
    %v99 = vadd.f32 %v59, %v78
    %v100 = vadd.f32 %v60, %v78
    %v101 = vadd.f32 %v61, %v78
    %v102 = vadd.f32 %v62, %v79
    %v103 = vadd.f32 %v63, %v79
    %v104 = vadd.f32 %v64, %v79
    %v105 = vadd.f32 %v65, %v79
    %v106 = vadd.f32 %v66, %v80
    %v107 = vadd.f32 %v67, %v80
    %v108 = vadd.f32 %v68, %v80
    %v109 = vadd.f32 %v69, %v80
    %v110 = vadd.f32 %v70, %v81
    %v111 = vadd.f32 %v71, %v81
    %v112 = vadd.f32 %v72, %v81
    %v113 = vadd.f32 %v73, %v81
    %114 = vst [vmem:[#allocation9] sm:$0xff] %v82
    %115 = vst [vmem:[#allocation9 + $0x8] sm:$0xff] %v83
    %116 = vst [vmem:[#allocation9 + $0x10] sm:$0xff] %v84
    %117 = vst [vmem:[#allocation9 + $0x18] sm:$0xff] %v85
    %118 = vst [vmem:[#allocation9 + $0x20] sm:$0xff] %v86
    %119 = vst [vmem:[#allocation9 + $0x28] sm:$0xff] %v87
    %120 = vst [vmem:[#allocation9 + $0x30] sm:$0xff] %v88
    %121 = vst [vmem:[#allocation9 + $0x38] sm:$0xff] %v89
    %122 = vst [vmem:[#allocation9 + $0x40] sm:$0xff] %v90
    %123 = vst [vmem:[#allocation9 + $0x48] sm:$0xff] %v91
    %124 = vst [vmem:[#allocation9 + $0x50] sm:$0xff] %v92
    %125 = vst [vmem:[#allocation9 + $0x58] sm:$0xff] %v93
    %126 = vst [vmem:[#allocation9 + $0x60] sm:$0xff] %v94
    %127 = vst [vmem:[#allocation9 + $0x68] sm:$0xff] %v95
    %128 = vst [vmem:[#allocation9 + $0x70] sm:$0xff] %v96
    %129 = vst [vmem:[#allocation9 + $0x78] sm:$0xff] %v97
    %130 = vst [vmem:[#allocation9 + $0x80] sm:$0xff] %v98
    %131 = vst [vmem:[#allocation9 + $0x88] sm:$0xff] %v99
    %132 = vst [vmem:[#allocation9 + $0x90] sm:$0xff] %v100
    %133 = vst [vmem:[#allocation9 + $0x98] sm:$0xff] %v101
    %134 = vst [vmem:[#allocation9 + $0xa0] sm:$0xff] %v102
    %135 = vst [vmem:[#allocation9 + $0xa8] sm:$0xff] %v103
    %136 = vst [vmem:[#allocation9 + $0xb0] sm:$0xff] %v104
    %137 = vst [vmem:[#allocation9 + $0xb8] sm:$0xff] %v105
    %138 = vst [vmem:[#allocation9 + $0xc0] sm:$0xff] %v106
    %139 = vst [vmem:[#allocation9 + $0xc8] sm:$0xff] %v107
    %140 = vst [vmem:[#allocation9 + $0xd0] sm:$0xff] %v108
    %141 = vst [vmem:[#allocation9 + $0xd8] sm:$0xff] %v109
    %142 = vst [vmem:[#allocation9 + $0xe0] sm:$0xff] %v110
    %143 = vst [vmem:[#allocation9 + $0xe8] sm:$0xff] %v111
    %144 = vst [vmem:[#allocation9 + $0xf0] sm:$0xff] %v112
    %145 = vst [vmem:[#allocation9 + $0xf8] sm:$0xff] %v113
    // Predicated region
    $region18: #{tpu_custom_call.1} parent=1 // pred_check
      _
    $region19: #{tpu_custom_call.1} parent=1 // pred_check_branch
      %147 = sbr.rel (0) target = $region21
    $region20: #{tpu_custom_call.1} parent=1 // pred_region
      %s149 = ssub.s32 4096, 4096
      %150 = vsyncadd [#allocation6], %s149
      %s151 = sshll.u32 [#allocation9], 4
      %s152 = int_to_ptr.vmem [resolvable:$true] %s151
      %157 = dma.vmem_to_hbm [thread:$0]  %s152, 4096, %s3, [#allocation6], 512, 512, 32
    $region21: #{tpu_custom_call.1} parent=1 // pred_fallthru
      _
    // Predicated region
    $region22: #{tpu_custom_call.1} parent=1 // pred_check
      _
    $region23: #{tpu_custom_call.1} parent=1 // pred_check_branch
      %159 = sbr.rel (0) target = $region25
    $region24: #{tpu_custom_call.1} parent=1 // pred_region
      %160 = dma.done [#allocation6], 4096
    $region25: #{tpu_custom_call.1} parent=1 // pred_fallthru
      _
    %161 = vsyncpa [#allocation5], 1
    %162 = vsyncpa [#allocation8], 1
    %163 = vsyncpa [#allocation6], 1

</llo_original>
